<compile_context>
chip_gen: v5e
topology: v5e:2x2
jax: 0.10.0
libtpu: 0.0.40
codegen_flags: <defaults>
</compile_context>

<pallas_src>
import functools

import jax
import jax.numpy as jnp
from jax.experimental import pallas as pl
from jax.experimental.pallas import tpu as pltpu


def _round_up(a, b):
    return ((a + b - 1) // b) * b


def _mlp_head_kernel(x_ref, wd_ref, bd_ref, g_ref, beta_ref, wh_ref, bh_ref,
                     o_ref, *, n_chunks, eps, use_ln):
    """One row-tile: dense -> tanh -> (layernorm) -> head, epilogue in f32."""
    tm, e = x_ref.shape
    sub = tm // n_chunks
    inv_e = jnp.float32(1.0 / e)

    # Hoist small operand loads out of the sub-chunk loop.
    bd = bd_ref[...].astype(jnp.float32)
    g = g_ref[...].astype(jnp.float32)
    beta = beta_ref[...].astype(jnp.float32)
    bh = bh_ref[...].astype(jnp.float32)

    # Static Python loop -> one basic block; sub-chunks are data-independent so
    # the scheduler overlaps chunk i's EUP/XLU/VPU epilogue with chunk i+1's
    # MXU matmuls.
    for c in range(n_chunks):
        rows = pl.ds(c * sub, sub)

        # dense: operands in the stored weight dtype (bf16 weights -> native
        # MXU path; no-op cast for f32), f32 accumulation.
        h = jnp.dot(x_ref[rows, :].astype(wd_ref.dtype), wd_ref[...],
                    preferred_element_type=jnp.float32)
        h = h + bd

        # activation  # TODO(synk): module's activation_fn is configurable;
        # tanh (the standard classification-head choice) is implemented.
        h = jnp.tanh(h)

        # dropout: inference mode -> identity.

        if use_ln:
            # LayerNorm over emb dim with two independent reductions.
            s1 = jnp.sum(h, axis=-1, keepdims=True)
            s2 = jnp.sum(h * h, axis=-1, keepdims=True)
            mean = s1 * inv_e
            var = jnp.maximum(s2 * inv_e - mean * mean, 0.0)
            h = (h - mean) * jax.lax.rsqrt(var + eps)
            h = h * g + beta

        # head: cast normalized activations to the head weight dtype so bf16
        # head weights also take the native MXU path.
        out = jnp.dot(h.astype(wh_ref.dtype), wh_ref[...],
                      preferred_element_type=jnp.float32)
        out = out + bh

        o_ref[rows, :] = out.astype(o_ref.dtype)


def mlp_classification_head(x, params, *, apply_pooling_fn=True,
                            use_layer_norm=True, tm=512):
    """Pooling / flatten / tiny padding glue in plain JAX; hot path in Pallas."""
    if apply_pooling_fn:
        x2d = x[:, 0]                      # (B, E)
        out_lead = (x.shape[0],)
    else:
        B, S, _ = x.shape
        x2d = x.reshape(B * S, x.shape[-1])  # (B*S, E), layout-preserving
        out_lead = (B, S)

    M, E = x2d.shape
    C = params["w_head"].shape[1]

    # --- lane-dense class dim: pad C to a multiple of 128 (tiny weight pad) --
    C_pad = max(128, _round_up(C, 128))
    w_head = params["w_head"]
    b_head = params["b_head"]
    if C_pad != C:
        w_head = jnp.pad(w_head, ((0, 0), (0, C_pad - C)))
        b_head = jnp.pad(b_head, ((0, 0), (0, C_pad - C)))

    # --- rows: only pad the (rare) sub-sublane remainder; ragged last tile is
    # handled by Pallas partial blocks (garbage rows never cross rows and their
    # stores are masked off). ---------------------------------------------------
    M_pad = _round_up(max(M, 8), 8)
    if M_pad != M:
        x2d = jnp.pad(x2d, ((0, M_pad - M), (0, 0)))

    # --- row tile: multiple of 8 sublanes; >= 2 grid steps when there is work
    # so the "parallel" axis can use both TensorCores on v7x. ------------------
    if M_pad > 8:
        TM = min(tm, _round_up((M_pad + 1) // 2, 8))
    else:
        TM = 8
    TM = max(TM, 8)

    out_dtype = x.dtype

    # --- generation-aware VMEM budget ----------------------------------------
    try:
        vmem_cap = int(pltpu.get_tpu_info().vmem_capacity_bytes)
    except Exception:
        vmem_cap = 64 << 20           # conservative (v7x per-TC capacity)
    vmem_cap = min(vmem_cap, 128 << 20)
    headroom = 8 << 20                # Mosaic internal scratch, etc.

    w_bytes = (params["w_dense"].size * params["w_dense"].dtype.itemsize
               + w_head.size * w_head.dtype.itemsize
               + 4 * (params["b_dense"].size + params["ln_gamma"].size
                      + params["ln_beta"].size + b_head.size))

    def budget(tm_):
        in_tile = 2 * tm_ * E * x2d.dtype.itemsize              # dbl-buffered in
        out_tile = 2 * tm_ * C_pad * jnp.dtype(out_dtype).itemsize  # dbl-buf out
        temps = 6 * tm_ * E * 4 + tm_ * C_pad * 4                # f32 body temps
        return w_bytes + in_tile + out_tile + temps

    while TM > 8 and budget(TM) > vmem_cap - headroom:
        TM = max(8, _round_up(TM // 2, 8))
    # TODO(synk): if w_bytes alone still exceeds the cap (very large emb_dim on
    # v7x), switch to the K-tiled accumulator scheme described at the top.

    vmem_limit = int(min(max(budget(TM), 16 << 20), vmem_cap - headroom))

    grid = (pl.cdiv(M_pad, TM),)

    # sub-chunking inside the body (each chunk a multiple of 8 rows)
    if TM >= 256 and TM % 32 == 0:
        n_chunks = 4
    elif TM >= 64 and TM % 16 == 0:
        n_chunks = 2
    else:
        n_chunks = 1

    # Grid-invariant operands: single resident VMEM copy (no double-buffering).
    resident = pl.BlockSpec(memory_space=pltpu.MemorySpace.VMEM)

    kernel = functools.partial(_mlp_head_kernel, n_chunks=n_chunks, eps=1e-5,
                               use_ln=use_layer_norm)

    out2d = pl.pallas_call(
        kernel,
        out_shape=jax.ShapeDtypeStruct((M_pad, C_pad), out_dtype),
        grid=grid,
        in_specs=[
            pl.BlockSpec((TM, E), lambda i: (i, 0)),   # x row tiles (pipelined)
            resident,    # dense weight (E, E)
            resident,    # dense bias   (1, E)
            resident,    # layernorm gamma (1, E)
            resident,    # layernorm beta  (1, E)
            resident,    # head weight (E, C_pad)
            resident,    # head bias   (1, C_pad)
        ],
        out_specs=pl.BlockSpec((TM, C_pad), lambda i: (i, 0)),
        compiler_params=pltpu.CompilerParams(
            dimension_semantics=("parallel",),
            vmem_limit_bytes=vmem_limit),
    )(x2d, params["w_dense"], params["b_dense"], params["ln_gamma"],
      params["ln_beta"], w_head, b_head)

    if M_pad != M or C_pad != C:
        out2d = out2d[:M, :C]
    return out2d.reshape(out_lead + (C,))


def init_params(key, emb_dim, num_classes, dtype=jnp.float32):
    """Deterministic synthetic parameter init (shapes match the nn.Module)."""
    k1, k2, k3, k4 = jax.random.split(key, 4)
    scale_d = 1.0 / jnp.sqrt(emb_dim)
    return {
        "w_dense": jax.random.uniform(k1, (emb_dim, emb_dim), dtype,
                                      -scale_d, scale_d),
        "b_dense": jax.random.uniform(k2, (1, emb_dim), dtype,
                                      -scale_d, scale_d),
        "ln_gamma": jnp.ones((1, emb_dim), dtype),
        "ln_beta": jnp.zeros((1, emb_dim), dtype),
        "w_head": jax.random.uniform(k3, (emb_dim, num_classes), dtype,
                                     -scale_d, scale_d),
        "b_head": jax.random.uniform(k4, (1, num_classes), dtype,
                                     -scale_d, scale_d),
    }


def _reference(x, params, apply_pooling_fn=True, use_layer_norm=True):
    """Pure-JAX f32 reference for a numerical sanity check."""
    p = {k: v.astype(jnp.float32) for k, v in params.items()}
    x = x.astype(jnp.float32)
    if apply_pooling_fn:
        x = x[:, 0]
    h = x @ p["w_dense"] + p["b_dense"]
    h = jnp.tanh(h)
    if use_layer_norm:
        mean = jnp.mean(h, axis=-1, keepdims=True)
        var = jnp.var(h, axis=-1, keepdims=True)
        h = (h - mean) * jax.lax.rsqrt(var + 1e-5)
        h = h * p["ln_gamma"] + p["ln_beta"]
    return h @ p["w_head"] + p["b_head"]


if __name__ == "__main__":
    key = jax.random.PRNGKey(0)

    # Test 1: pooled path, tiny shapes (single row tile, padded class dim).
    B, S, E, C = 2, 8, 32, 8
    kx, kp, key = jax.random.split(key, 3)
    x = jax.random.normal(kx, (B, S, E), jnp.float32)
    params = init_params(kp, E, C)

    out = mlp_classification_head(x, params, apply_pooling_fn=True)
    out = jax.block_until_ready(out)
    ref = _reference(x, params, apply_pooling_fn=True)
    assert out.shape == (B, C), out.shape
    assert jnp.allclose(out, ref, atol=1e-4, rtol=1e-4), (
        float(jnp.max(jnp.abs(out - ref))))

    # Test 2: full-sequence path, M > TM -> multi-step grid + body sub-chunks.
    B2, S2, E2, C2 = 4, 128, 256, 10
    kx2, kp2, key = jax.random.split(key, 3)
    x2 = jax.random.normal(kx2, (B2, S2, E2), jnp.float32)
    params2 = init_params(kp2, E2, C2)

    out2 = mlp_classification_head(x2, params2, apply_pooling_fn=False)
    out2 = jax.block_until_ready(out2)
    ref2 = _reference(x2, params2, apply_pooling_fn=False)
    assert out2.shape == (B2, S2, C2), out2.shape
    assert jnp.allclose(out2, ref2, atol=1e-3, rtol=1e-3), (
        float(jnp.max(jnp.abs(out2 - ref2))))

    # Test 3: bf16 parameters -> native bf16 MXU path (loose tolerance vs f32).
    B3, S3, E3, C3 = 16, 4, 128, 12
    kx3, kp3 = jax.random.split(key)
    x3 = jax.random.normal(kx3, (B3, S3, E3), jnp.float32)
    params3 = init_params(kp3, E3, C3, dtype=jnp.bfloat16)

    out3 = mlp_classification_head(x3, params3, apply_pooling_fn=True)
    out3 = jax.block_until_ready(out3)
    ref3 = _reference(x3, params3, apply_pooling_fn=True)
    assert out3.shape == (B3, C3), out3.shape
    assert jnp.allclose(out3.astype(jnp.float32), ref3, atol=0.1, rtol=0.1), (
        float(jnp.max(jnp.abs(out3.astype(jnp.float32) - ref3))))

    print("KERNEL_OK")
</pallas_src>

<mosaic_0001>
module attributes {stable_mosaic.version = 11 : i64} {
  func.func @_mlp_head_kernel(%arg0: i32, %arg1: memref<8x32xf32, #tpu.memory_space<vmem>>, %arg2: memref<32x32xf32, #tpu.memory_space<vmem>>, %arg3: memref<1x32xf32, #tpu.memory_space<vmem>>, %arg4: memref<1x32xf32, #tpu.memory_space<vmem>>, %arg5: memref<1x32xf32, #tpu.memory_space<vmem>>, %arg6: memref<32x128xf32, #tpu.memory_space<vmem>>, %arg7: memref<1x128xf32, #tpu.memory_space<vmem>>, %arg8: memref<8x128xf32, #tpu.memory_space<vmem>>) attributes {dimension_semantics = [#tpu.dimension_semantics<parallel>], iteration_bounds = array<i64: 1>, scalar_prefetch = 0 : i64, scratch_operands = 0 : i64, tpu.core_type = #tpu.core_type<tc>, window_params = [{transform_indices = @transform_0, window_bounds = array<i64: 8, 32>}, {pipeline_mode = #tpu.pipeline_mode<synchronous>, transform_indices = @transform_1, window_bounds = array<i64: 32, 32>}, {pipeline_mode = #tpu.pipeline_mode<synchronous>, transform_indices = @transform_2, window_bounds = array<i64: 1, 32>}, {pipeline_mode = #tpu.pipeline_mode<synchronous>, transform_indices = @transform_3, window_bounds = array<i64: 1, 32>}, {pipeline_mode = #tpu.pipeline_mode<synchronous>, transform_indices = @transform_4, window_bounds = array<i64: 1, 32>}, {pipeline_mode = #tpu.pipeline_mode<synchronous>, transform_indices = @transform_5, window_bounds = array<i64: 32, 128>}, {pipeline_mode = #tpu.pipeline_mode<synchronous>, transform_indices = @transform_6, window_bounds = array<i64: 1, 128>}, {transform_indices = @transform_7, window_bounds = array<i64: 8, 128>}]} {
    %c0 = arith.constant 0 : index
    %c0_0 = arith.constant 0 : index
    %0 = vector.load %arg3[%c0, %c0_0] : memref<1x32xf32, #tpu.memory_space<vmem>>, vector<1x32xf32>
    %c0_1 = arith.constant 0 : index
    %c0_2 = arith.constant 0 : index
    %1 = vector.load %arg4[%c0_1, %c0_2] : memref<1x32xf32, #tpu.memory_space<vmem>>, vector<1x32xf32>
    %c0_3 = arith.constant 0 : index
    %c0_4 = arith.constant 0 : index
    %2 = vector.load %arg5[%c0_3, %c0_4] : memref<1x32xf32, #tpu.memory_space<vmem>>, vector<1x32xf32>
    %c0_5 = arith.constant 0 : index
    %c0_6 = arith.constant 0 : index
    %3 = vector.load %arg7[%c0_5, %c0_6] : memref<1x128xf32, #tpu.memory_space<vmem>>, vector<1x128xf32>
    %c0_7 = arith.constant 0 : index
    %c0_8 = arith.constant 0 : index
    %4 = vector.load %arg1[%c0_7, %c0_8] : memref<8x32xf32, #tpu.memory_space<vmem>>, vector<8x32xf32>
    %c0_9 = arith.constant 0 : index
    %c0_10 = arith.constant 0 : index
    %5 = vector.load %arg2[%c0_9, %c0_10] : memref<32x32xf32, #tpu.memory_space<vmem>>, vector<32x32xf32>
    %cst = arith.constant dense<0.000000e+00> : vector<8x32xf32>
    %6 = tpu.matmul %4, %5, %cst {dimension_numbers = #tpu.dot_dimension_numbers<[1], [0], [0], [1], [0, 0, 1, 1], [], []>} : vector<8x32xf32>, vector<32x32xf32>, vector<8x32xf32> -> vector<8x32xf32>
    %7 = vector.broadcast %0 : vector<1x32xf32> to vector<8x32xf32>
    %8 = arith.addf %6, %7 : vector<8x32xf32>
    %9 = math.tanh %8 : vector<8x32xf32>
    %cst_11 = arith.constant dense<0.000000e+00> : vector<8xf32>
    %10 = vector.multi_reduction <add>, %9, %cst_11 [1] : vector<8x32xf32> to vector<8xf32>
    %11 = vector.shape_cast %10 : vector<8xf32> to vector<8x1xf32>
    %12 = arith.mulf %9, %9 : vector<8x32xf32>
    %cst_12 = arith.constant dense<0.000000e+00> : vector<8xf32>
    %13 = vector.multi_reduction <add>, %12, %cst_12 [1] : vector<8x32xf32> to vector<8xf32>
    %14 = vector.shape_cast %13 : vector<8xf32> to vector<8x1xf32>
    %cst_13 = arith.constant 3.125000e-02 : f32
    %15 = vector.broadcast %cst_13 : f32 to vector<8x1xf32>
    %16 = arith.mulf %11, %15 : vector<8x1xf32>
    %cst_14 = arith.constant 3.125000e-02 : f32
    %17 = vector.broadcast %cst_14 : f32 to vector<8x1xf32>
    %18 = arith.mulf %14, %17 : vector<8x1xf32>
    %19 = arith.mulf %16, %16 : vector<8x1xf32>
    %20 = arith.subf %18, %19 : vector<8x1xf32>
    %cst_15 = arith.constant 0.000000e+00 : f32
    %21 = vector.broadcast %cst_15 : f32 to vector<8x1xf32>
    %22 = arith.maximumf %20, %21 : vector<8x1xf32>
    %23 = vector.broadcast %16 : vector<8x1xf32> to vector<8x32xf32>
    %24 = arith.subf %9, %23 : vector<8x32xf32>
    %cst_16 = arith.constant 9.99999974E-6 : f32
    %25 = vector.broadcast %cst_16 : f32 to vector<8x1xf32>
    %26 = arith.addf %22, %25 : vector<8x1xf32>
    %27 = math.rsqrt %26 : vector<8x1xf32>
    %28 = vector.broadcast %27 : vector<8x1xf32> to vector<8x32xf32>
    %29 = arith.mulf %24, %28 : vector<8x32xf32>
    %30 = vector.broadcast %1 : vector<1x32xf32> to vector<8x32xf32>
    %31 = arith.mulf %29, %30 : vector<8x32xf32>
    %32 = vector.broadcast %2 : vector<1x32xf32> to vector<8x32xf32>
    %33 = arith.addf %31, %32 : vector<8x32xf32>
    %c0_17 = arith.constant 0 : index
    %c0_18 = arith.constant 0 : index
    %34 = vector.load %arg6[%c0_17, %c0_18] : memref<32x128xf32, #tpu.memory_space<vmem>>, vector<32x128xf32>
    %cst_19 = arith.constant dense<0.000000e+00> : vector<8x128xf32>
    %35 = tpu.matmul %33, %34, %cst_19 {dimension_numbers = #tpu.dot_dimension_numbers<[1], [0], [0], [1], [0, 0, 1, 1], [], []>} : vector<8x32xf32>, vector<32x128xf32>, vector<8x128xf32> -> vector<8x128xf32>
    %36 = vector.broadcast %3 : vector<1x128xf32> to vector<8x128xf32>
    %37 = arith.addf %35, %36 : vector<8x128xf32>
    %c0_20 = arith.constant 0 : index
    %c0_21 = arith.constant 0 : index
    %38 = vector.load %arg8[%c0_20, %c0_21] : memref<8x128xf32, #tpu.memory_space<vmem>>, vector<8x128xf32>
    tpu.vector_store %arg8[%c0_20, %c0_21], %37 {strides = array<i32>} : memref<8x128xf32, #tpu.memory_space<vmem>>, vector<8x128xf32>,
    return
  }
  func.func @transform_0(%arg0: i32) -> (i32, i32) {
    %c0_i32 = arith.constant 0 : i32
    %c0_i32_0 = arith.constant 0 : i32
    return %arg0, %c0_i32 : i32, i32
  }
  func.func @transform_1(%arg0: i32) -> (i32, i32) {
    %c0_i32 = arith.constant 0 : i32
    %c0_i32_0 = arith.constant 0 : i32
    %c0_i32_1 = arith.constant 0 : i32
    return %c0_i32, %c0_i32_0 : i32, i32
  }
  func.func @transform_2(%arg0: i32) -> (i32, i32) {
    %c0_i32 = arith.constant 0 : i32
    %c0_i32_0 = arith.constant 0 : i32
    %c0_i32_1 = arith.constant 0 : i32
    return %c0_i32, %c0_i32_0 : i32, i32
  }
  func.func @transform_3(%arg0: i32) -> (i32, i32) {
    %c0_i32 = arith.constant 0 : i32
    %c0_i32_0 = arith.constant 0 : i32
    %c0_i32_1 = arith.constant 0 : i32
    return %c0_i32, %c0_i32_0 : i32, i32
  }
  func.func @transform_4(%arg0: i32) -> (i32, i32) {
    %c0_i32 = arith.constant 0 : i32
    %c0_i32_0 = arith.constant 0 : i32
    %c0_i32_1 = arith.constant 0 : i32
    return %c0_i32, %c0_i32_0 : i32, i32
  }
  func.func @transform_5(%arg0: i32) -> (i32, i32) {
    %c0_i32 = arith.constant 0 : i32
    %c0_i32_0 = arith.constant 0 : i32
    %c0_i32_1 = arith.constant 0 : i32
    return %c0_i32, %c0_i32_0 : i32, i32
  }
  func.func @transform_6(%arg0: i32) -> (i32, i32) {
    %c0_i32 = arith.constant 0 : i32
    %c0_i32_0 = arith.constant 0 : i32
    %c0_i32_1 = arith.constant 0 : i32
    return %c0_i32, %c0_i32_0 : i32, i32
  }
  func.func @transform_7(%arg0: i32) -> (i32, i32) {
    %c0_i32 = arith.constant 0 : i32
    %c0_i32_0 = arith.constant 0 : i32
    return %arg0, %c0_i32 : i32, i32
  }
}

</mosaic_0001>

<llo_original>
// kernel: tpu_custom_call.1
$region0: #{tpu_custom_call.1}
  #allocation0 [shape = 'u32[]', space=smem, size = 0x4, offset = 0x4, fixed_abs, tag = 'smem constant byte address 0x4 - core index']
  #allocation1 [shape = 'u32[72,128]{1,0:T(1,128)}', space=vmem, size = 0x9000, scoped, tag = 'internal scratch']
  %s0 = inlined_call_operand.hbm [shape: f32[8,32], index: 0, kind: input, shape index: {}]
  %s1 = inlined_call_operand.hbm [shape: f32[32,32], index: 1, kind: input, shape index: {}]
  %s2 = inlined_call_operand.vmem [shape: f32[1,32], index: 2, kind: input, shape index: {}]
  %s3 = inlined_call_operand.vmem [shape: f32[1,32], index: 3, kind: input, shape index: {}]
  %s4 = inlined_call_operand.vmem [shape: f32[1,32], index: 4, kind: input, shape index: {}]
  %s5 = inlined_call_operand.hbm [shape: f32[32,128], index: 5, kind: input, shape index: {}]
  %s6 = inlined_call_operand.vmem [shape: f32[1,128], index: 6, kind: input, shape index: {}]
  %s7 = inlined_call_operand.hbm [shape: f32[8,128], index: 7, kind: output, shape index: {}]
  %s8 = sld [smem:[#allocation0]]
  $region50: #{tpu_custom_call.1} parent=0
    _
  %s10 = ssub.s32 1, %s8
  %s11 = scalar_select 0, %s10, %s8
  $region1: #{tpu_custom_call.1} parent=0
    #allocation2 [shape = 'u8[4096]{0}', space=vmem, size = 0x1000, scoped, tag = 'input window, operand 0, single buffered']
    #allocation3 [shape = 's32[1]{0}', space=sflag, size = 0x4, scoped, tag = 'scoped memory for tpu_custom_call.1']
    #allocation4 [shape = 's32[1]{0}', space=sflag, size = 0x4, scoped, tag = 'scoped memory for tpu_custom_call.1']
    #allocation5 [shape = 'u8[16384]{0}', space=vmem, size = 0x4000, scoped, tag = 'input window, operand 1, single buffered']
    #allocation6 [shape = 's32[1]{0}', space=sflag, size = 0x4, scoped, tag = 'scoped memory for tpu_custom_call.1']
    #allocation7 [shape = 'u8[16384]{0}', space=vmem, size = 0x4000, scoped, tag = 'input window, operand 5, single buffered']
    #allocation8 [shape = 'u8[4096]{0}', space=vmem, size = 0x1000, scoped, tag = 'output window, operand 0, single buffered']
    %12 = vsyncpa [#allocation3], 0
    %13 = vsyncpa [#allocation6], 0
    %14 = vsyncpa [#allocation4], 0
    // Predicated region
    $region2: #{tpu_custom_call.1} parent=1 // pred_check
      _
    $region3: #{tpu_custom_call.1} parent=1 // pred_check_branch
      %16 = sbr.rel (0) target = $region5
    $region4: #{tpu_custom_call.1} parent=1 // pred_region
      %18 = vsyncadd [#allocation3], 0
      %s20 = sshll.u32 %s0, 4
      %s21 = int_to_ptr.hbm [resolvable:$true] %s20
      %s22 = sshll.u32 [#allocation2], 4
      %s23 = int_to_ptr.vmem [resolvable:$true] %s22
      %25 = dma.hbm_to_vmem [thread:$0]  %s21, 128, %s23, [#allocation3]
    $region5: #{tpu_custom_call.1} parent=1 // pred_fallthru
      _
    // Predicated region
    $region6: #{tpu_custom_call.1} parent=1 // pred_check
      _
    $region7: #{tpu_custom_call.1} parent=1 // pred_check_branch
      %27 = sbr.rel (0) target = $region9
    $region8: #{tpu_custom_call.1} parent=1 // pred_region
      %29 = vsyncadd [#allocation6], 0
      %s30 = sshll.u32 %s1, 4
      %s31 = int_to_ptr.hbm [resolvable:$true] %s30
      %s32 = sshll.u32 [#allocation5], 4
      %s33 = int_to_ptr.vmem [resolvable:$true] %s32
      %38 = dma.hbm_to_vmem [thread:$0]  %s31, 512, %s33, [#allocation6], 128, 128, 8
    $region9: #{tpu_custom_call.1} parent=1 // pred_fallthru
      _
    // Predicated region
    $region10: #{tpu_custom_call.1} parent=1 // pred_check
      _
    $region11: #{tpu_custom_call.1} parent=1 // pred_check_branch
      %40 = sbr.rel (0) target = $region13
    $region12: #{tpu_custom_call.1} parent=1 // pred_region
      _
    $region13: #{tpu_custom_call.1} parent=1 // pred_fallthru
      _
    // Predicated region
    $region14: #{tpu_custom_call.1} parent=1 // pred_check
      _
    $region15: #{tpu_custom_call.1} parent=1 // pred_check_branch
      %42 = sbr.rel (0) target = $region17
    $region16: #{tpu_custom_call.1} parent=1 // pred_region
      _
    $region17: #{tpu_custom_call.1} parent=1 // pred_fallthru
      _
    // Predicated region
    $region18: #{tpu_custom_call.1} parent=1 // pred_check
      _
    $region19: #{tpu_custom_call.1} parent=1 // pred_check_branch
      %44 = sbr.rel (0) target = $region21
    $region20: #{tpu_custom_call.1} parent=1 // pred_region
      _
    $region21: #{tpu_custom_call.1} parent=1 // pred_fallthru
      _
    // Predicated region
    $region22: #{tpu_custom_call.1} parent=1 // pred_check
      _
    $region23: #{tpu_custom_call.1} parent=1 // pred_check_branch
      %46 = sbr.rel (0) target = $region25
    $region24: #{tpu_custom_call.1} parent=1 // pred_region
      %48 = vsyncadd [#allocation6], 0
      %s49 = sshll.u32 %s5, 4
      %s50 = int_to_ptr.hbm [resolvable:$true] %s49
      %s51 = sshll.u32 [#allocation7], 4
      %s52 = int_to_ptr.vmem [resolvable:$true] %s51
      %57 = dma.hbm_to_vmem [thread:$0]  %s50, 512, %s52, [#allocation6], 128, 128, 8
    $region25: #{tpu_custom_call.1} parent=1 // pred_fallthru
      _
    // Predicated region
    $region26: #{tpu_custom_call.1} parent=1 // pred_check
      _
    $region27: #{tpu_custom_call.1} parent=1 // pred_check_branch
      %59 = sbr.rel (0) target = $region29
    $region28: #{tpu_custom_call.1} parent=1 // pred_region
      _
    $region29: #{tpu_custom_call.1} parent=1 // pred_fallthru
      _
    // Predicated region
    $region30: #{tpu_custom_call.1} parent=1 // pred_check
      _
    $region31: #{tpu_custom_call.1} parent=1 // pred_check_branch
      %61 = sbr.rel (0) target = $region33
    $region32: #{tpu_custom_call.1} parent=1 // pred_region
      %63 = dma.done [#allocation3], 128
    $region33: #{tpu_custom_call.1} parent=1 // pred_fallthru
      _
    // Predicated region
    $region34: #{tpu_custom_call.1} parent=1 // pred_check
      _
    $region35: #{tpu_custom_call.1} parent=1 // pred_check_branch
      %65 = sbr.rel (0) target = $region37
    $region36: #{tpu_custom_call.1} parent=1 // pred_region
      %67 = dma.done [#allocation6], 512
    $region37: #{tpu_custom_call.1} parent=1 // pred_fallthru
      _
    // Predicated region
    $region38: #{tpu_custom_call.1} parent=1 // pred_check
      _
    $region39: #{tpu_custom_call.1} parent=1 // pred_check_branch
      %69 = sbr.rel (0) target = $region41
    $region40: #{tpu_custom_call.1} parent=1 // pred_region
      %71 = dma.done [#allocation6], 512
    $region41: #{tpu_custom_call.1} parent=1 // pred_fallthru
      _
    %v72 = vld [vmem:[%s2] sm:$0x1]
    %v73 = vld [vmem:[%s3] sm:$0x1]
    %v74 = vld [vmem:[%s4] sm:$0x1]
    %v75 = vld [vmem:[%s6] sm:$0x1]
    %v76 = vld [vmem:[#allocation2] sm:$0xff]
    %v77 = vld [vmem:[#allocation5] sm:$0xff]
    %v78 = vld [vmem:[#allocation5 + $0x8] sm:$0xff]
    %v79 = vld [vmem:[#allocation5 + $0x10] sm:$0xff]
    %v80 = vld [vmem:[#allocation5 + $0x18] sm:$0xff]
    %v82 = vperm.slane %v72, 0
    %vm84 = vcmask 261120
    %v86 = vsel %vm84, %v76, 0
    %88 = vmatpush.msra.mxu0 0.0
    %89 = vmatpush.msra.mxu0 0.0
    %90 = vmatpush.msra.mxu0 0.0
    %91 = vmatpush.msra.mxu0 0.0
    %92 = vmatpush.msra.mxu0 0.0
    %93 = vmatpush.msra.mxu0 0.0
    %94 = vmatpush.msra.mxu0 0.0
    %95 = vmatpush.msra.mxu0 0.0
    %96 = vmatpush.msra.mxu0 0.0
    %97 = vmatpush.msra.mxu0 0.0
    %98 = vmatpush.msra.mxu0 0.0
    %99 = vmatpush.msra.mxu0 0.0
    %100 = vmatpush.msra.mxu0 %v80
    %101 = vmatpush.msra.mxu0 %v79
    %102 = vmatpush.msra.mxu0 %v78
    %103 = vmatpush.msra.mxu0 %v77
    %104 = vmatmul.f32.gmra.mxu0 %v86
    %v105 = vpop.f32.mrf.mxu0
    %v106 = vadd.f32 %v82, %v105
    %107 = vdwg.mxu0
    %v108 = vtanh.pop %v106
    %v109 = vsel %vm84, %v108, 0.0
    %110 = vadd.xlane.f32.xlu0 %v109
    %v111 = vpop.xlane.xlu0 %110
    %v112 = vmul.f32 %v108, %v108
    %v113 = vsel %vm84, %v112, 0.0
    %114 = vadd.xlane.f32.xlu0 %v113
    %v115 = vpop.xlane.xlu0 %114
    %v116 = vmul.f32 %v111, 0.03125
    %v117 = vmul.f32 %v115, 0.03125
    %v118 = vmul.f32 %v116, %v116
    %v119 = vsub.f32 %v117, %v118
    %v120 = vmax.f32 %v119, 0.0
    %v121 = vsub.f32 %v108, %v116
    %v122 = vadd.f32 %v120, 1e-05
    %v123 = vrsqrt.pop %v122
    %v124 = vmul.f32 %v123, %v122
    %v125 = vmul.f32 %v124, %v123
    %v126 = vmul.f32 0.5, %v125
    %v127 = vsub.f32 1.5, %v126
    %v128 = vmul.f32 %v123, %v127
    %vm129 = vweird.f32 %v122
    %vm130 = vweird.f32 %v123
    %vm131 = vmor %vm129, %vm130
    %v132 = vsel %vm131, %v123, %v128
    %v133 = vmul.f32 %v121, %v132
    %v135 = vperm.slane %v73, 0
    %v137 = vmul.f32 %v133, %v135
    %v139 = vperm.slane %v74, 0
    %v141 = vadd.f32 %v137, %v139
    %v142 = vld [vmem:[#allocation7] sm:$0xff]
    %v143 = vld [vmem:[#allocation7 + $0x8] sm:$0xff]
    %v144 = vld [vmem:[#allocation7 + $0x10] sm:$0xff]
    %v145 = vld [vmem:[#allocation7 + $0x18] sm:$0xff]
    %v147 = vperm.slane %v75, 0
    %v150 = vsel %vm84, %v141, 0
    %152 = vmatpush.msra.mxu0 0.0
    %153 = vmatpush.msra.mxu0 0.0
    %154 = vmatpush.msra.mxu0 0.0
    %155 = vmatpush.msra.mxu0 0.0
    %156 = vmatpush.msra.mxu0 0.0
    %157 = vmatpush.msra.mxu0 0.0
    %158 = vmatpush.msra.mxu0 0.0
    %159 = vmatpush.msra.mxu0 0.0
    %160 = vmatpush.msra.mxu0 0.0
    %161 = vmatpush.msra.mxu0 0.0
    %162 = vmatpush.msra.mxu0 0.0
    %163 = vmatpush.msra.mxu0 0.0
    %164 = vmatpush.msra.mxu0 %v145
    %165 = vmatpush.msra.mxu0 %v144
    %166 = vmatpush.msra.mxu0 %v143
    %167 = vmatpush.msra.mxu0 %v142
    %168 = vmatmul.f32.gmra.mxu0 %v150
    %v169 = vpop.f32.mrf.mxu0
    %v170 = vadd.f32 %v147, %v169
    %171 = vdwg.mxu0
    %172 = vst [vmem:[#allocation8] sm:$0xff] %v170
    // Predicated region
    $region42: #{tpu_custom_call.1} parent=1 // pred_check
      _
    $region43: #{tpu_custom_call.1} parent=1 // pred_check_branch
      %174 = sbr.rel (0) target = $region45
    $region44: #{tpu_custom_call.1} parent=1 // pred_region
      %176 = vsyncadd [#allocation4], 0
      %s178 = sshll.u32 [#allocation8], 4
      %s179 = int_to_ptr.vmem [resolvable:$true] %s178
      %s180 = sshll.u32 %s7, 4
      %s181 = int_to_ptr.hbm [resolvable:$true] %s180
      %183 = dma.vmem_to_hbm [thread:$0]  %s179, 128, %s181, [#allocation4]
    $region45: #{tpu_custom_call.1} parent=1 // pred_fallthru
      _
    // Predicated region
    $region46: #{tpu_custom_call.1} parent=1 // pred_check
      _
    $region47: #{tpu_custom_call.1} parent=1 // pred_check_branch
      %185 = sbr.rel (0) target = $region49
    $region48: #{tpu_custom_call.1} parent=1 // pred_region
      %187 = dma.done [#allocation4], 128
    $region49: #{tpu_custom_call.1} parent=1 // pred_fallthru
      _
    %188 = vsyncpa [#allocation3], 1
    %189 = vsyncpa [#allocation6], 1
    %190 = vsyncpa [#allocation4], 1

</llo_original>
